<compile_context>
chip_gen: v7x
topology: tpu7x:2x2x1
jax: 0.10.0
libtpu: 0.0.40
codegen_flags: <defaults>
</compile_context>

<pallas_src>
import functools

import jax
import jax.numpy as jnp
from jax.experimental import pallas as pl
from jax.experimental.pallas import tpu as pltpu

BN_EPS = 1e-5


# --------------------------------------------------------------------------- #
# Generation-aware knobs
# --------------------------------------------------------------------------- #
def _vmem_limit_bytes():
    # ~48 MiB on v7x (64 MiB physical), ~96 MiB on v5e/v6e (128 MiB physical).
    try:
        cap = int(pltpu.get_tpu_info().vmem_capacity_bytes)
    except Exception:
        cap = 64 * 1024 * 1024
    return max(32 * 1024 * 1024, min(cap * 3 // 4, 100 * 1024 * 1024))


def _cparams(semantics):
    return pltpu.CompilerParams(dimension_semantics=semantics,
                                vmem_limit_bytes=_vmem_limit_bytes())


def _pick_channel_tile(c):
    # Prefer lane widths that are multiples of 128 (v5e 128-wide / v6e-v7x
    # 256-wide MXU N) AND give >= 2 channel-tile grid steps (megacore sharding
    # + weight-DMA/compute overlap).  Tiny channel counts: one full block.
    for t in (256, 128):
        if c % t == 0 and c // t >= 2:
            return t
    return c


def _pick_row_tile(m):
    for t in (512, 256, 128):
        if m % t == 0:
            return t
    return m  # tiny / odd M: single resident row block


# --------------------------------------------------------------------------- #
# Kernel bodies
# --------------------------------------------------------------------------- #
def _conv_stats_kernel(x_ref, w_ref, raw_ref, stats_ref):
    """(tm, K)bf16 @ (K, tc)bf16 -> raw f32; accumulate per-channel sum/sumsq."""
    mi = pl.program_id(1)  # row-tile axis (innermost, "arbitrary")
    h = jnp.dot(x_ref[...], w_ref[...], preferred_element_type=jnp.float32)
    raw_ref[...] = h

    @pl.when(mi == 0)
    def _():
        stats_ref[...] = jnp.zeros_like(stats_ref)

    # TODO(synk): if the bundle shows these row-sums are XLU-bound, move them
    # onto the MXU via ones(1, tm) @ h / ones(1, tm) @ (h*h).
    s1 = jnp.sum(h, axis=0, keepdims=True)
    s2 = jnp.sum(h * h, axis=0, keepdims=True)
    stats_ref[...] += jnp.concatenate([s1, s2], axis=0)


def _conv_proj_stats_kernel(x_ref, w_ref, xs_ref, ws_ref,
                            raw_ref, rawsc_ref, stats_ref, statssc_ref):
    """Main 3x3 conv + 1x1 projection-shortcut conv, both with BN-stat accum."""
    mi = pl.program_id(1)
    h = jnp.dot(x_ref[...], w_ref[...], preferred_element_type=jnp.float32)
    hs = jnp.dot(xs_ref[...], ws_ref[...], preferred_element_type=jnp.float32)
    raw_ref[...] = h
    rawsc_ref[...] = hs

    @pl.when(mi == 0)
    def _():
        stats_ref[...] = jnp.zeros_like(stats_ref)
        statssc_ref[...] = jnp.zeros_like(statssc_ref)

    stats_ref[...] += jnp.concatenate(
        [jnp.sum(h, axis=0, keepdims=True),
         jnp.sum(h * h, axis=0, keepdims=True)], axis=0)
    statssc_ref[...] += jnp.concatenate(
        [jnp.sum(hs, axis=0, keepdims=True),
         jnp.sum(hs * hs, axis=0, keepdims=True)], axis=0)


def _bn_scale_bias(stats, gamma, beta, inv_m):
    """Folded training-mode BN: y = h*scale + bias (per-channel vectors)."""
    mean = stats[0:1, :] * inv_m
    # TODO(synk): one-pass E[x^2]-E[x]^2 is cancellation-prone at extreme
    # |mean|/std ratios; switch to Welford/two-pass if it ever matters.
    var = jnp.maximum(stats[1:2, :] * inv_m - mean * mean, 0.0)
    scale = gamma * jax.lax.rsqrt(var + BN_EPS)  # rsqrt -> EUP slot
    bias = beta - mean * scale
    return scale, bias


def _bn_relu_kernel(raw_ref, stats_ref, g_ref, b_ref, o_ref, *, inv_m):
    scale, bias = _bn_scale_bias(stats_ref[...], g_ref[...], b_ref[...], inv_m)
    o_ref[...] = jnp.maximum(raw_ref[...] * scale + bias, 0.0).astype(o_ref.dtype)


def _bn_add_relu_id_kernel(raw_ref, stats_ref, g_ref, b_ref, sc_ref, o_ref, *,
                           inv_m):
    scale, bias = _bn_scale_bias(stats_ref[...], g_ref[...], b_ref[...], inv_m)
    y = raw_ref[...] * scale + bias + sc_ref[...].astype(jnp.float32)
    o_ref[...] = jnp.maximum(y, 0.0).astype(o_ref.dtype)


def _bn_add_relu_proj_kernel(raw_ref, stats_ref, g_ref, b_ref,
                             rawsc_ref, statssc_ref, gs_ref, bs_ref, o_ref, *,
                             inv_m):
    scale, bias = _bn_scale_bias(stats_ref[...], g_ref[...], b_ref[...], inv_m)
    ssc, bsc = _bn_scale_bias(statssc_ref[...], gs_ref[...], bs_ref[...], inv_m)
    y = (raw_ref[...] * scale + bias) + (rawsc_ref[...] * ssc + bsc)
    o_ref[...] = jnp.maximum(y, 0.0).astype(o_ref.dtype)


# --------------------------------------------------------------------------- #
# pallas_call wrappers
# --------------------------------------------------------------------------- #
def _call_conv_stats(x2d, w2d):
    """x2d: (M, K) bf16, w2d: (K, Cout) bf16 -> raw (M, Cout) f32, stats (2, Cout) f32."""
    m, k = x2d.shape
    cout = w2d.shape[1]
    tm, tc = _pick_row_tile(m), _pick_channel_tile(cout)
    grid = (cout // tc, m // tm)  # channel-tile outer (parallel), rows inner (arbitrary)
    return pl.pallas_call(
        _conv_stats_kernel,
        out_shape=(jax.ShapeDtypeStruct((m, cout), jnp.float32),
                   jax.ShapeDtypeStruct((2, cout), jnp.float32)),
        grid_spec=pltpu.PrefetchScalarGridSpec(
            num_scalar_prefetch=0,
            grid=grid,
            in_specs=[
                pl.BlockSpec((tm, k), lambda cj, mi: (mi, 0)),   # im2col rows
                pl.BlockSpec((k, tc), lambda cj, mi: (0, cj)),   # weight tile (resident over rows)
            ],
            out_specs=[
                pl.BlockSpec((tm, tc), lambda cj, mi: (mi, cj)),  # raw conv out
                pl.BlockSpec((2, tc), lambda cj, mi: (0, cj)),    # stats accumulator
            ]),
        compiler_params=_cparams(("parallel", "arbitrary")),
    )(x2d, w2d)


def _call_conv_proj_stats(x2d, w2d, xs2d, ws2d):
    m, k = x2d.shape
    cout = w2d.shape[1]
    cin = xs2d.shape[1]
    tm, tc = _pick_row_tile(m), _pick_channel_tile(cout)
    grid = (cout // tc, m // tm)
    return pl.pallas_call(
        _conv_proj_stats_kernel,
        out_shape=(jax.ShapeDtypeStruct((m, cout), jnp.float32),
                   jax.ShapeDtypeStruct((m, cout), jnp.float32),
                   jax.ShapeDtypeStruct((2, cout), jnp.float32),
                   jax.ShapeDtypeStruct((2, cout), jnp.float32)),
        grid_spec=pltpu.PrefetchScalarGridSpec(
            num_scalar_prefetch=0,
            grid=grid,
            in_specs=[
                pl.BlockSpec((tm, k), lambda cj, mi: (mi, 0)),
                pl.BlockSpec((k, tc), lambda cj, mi: (0, cj)),
                pl.BlockSpec((tm, cin), lambda cj, mi: (mi, 0)),  # shortcut rows
                pl.BlockSpec((cin, tc), lambda cj, mi: (0, cj)),  # 1x1 weight tile
            ],
            out_specs=[
                pl.BlockSpec((tm, tc), lambda cj, mi: (mi, cj)),
                pl.BlockSpec((tm, tc), lambda cj, mi: (mi, cj)),
                pl.BlockSpec((2, tc), lambda cj, mi: (0, cj)),
                pl.BlockSpec((2, tc), lambda cj, mi: (0, cj)),
            ]),
        compiler_params=_cparams(("parallel", "arbitrary")),
    )(x2d, w2d, xs2d, ws2d)


def _elementwise_specs(m, cout, tm, tc, n_param_pairs):
    """(raw, stats, gamma, beta) spec pattern repeated n_param_pairs times."""
    specs = []
    for _ in range(n_param_pairs):
        specs += [
            pl.BlockSpec((tm, tc), lambda mi, cj: (mi, cj)),
            pl.BlockSpec((2, tc), lambda mi, cj: (0, cj)),
            pl.BlockSpec((1, tc), lambda mi, cj: (0, cj)),
            pl.BlockSpec((1, tc), lambda mi, cj: (0, cj)),
        ]
    return specs


def _call_bn_relu(raw, stats, gamma, beta, out_dtype):
    m, cout = raw.shape
    tm, tc = _pick_row_tile(m), _pick_channel_tile(cout)
    return pl.pallas_call(
        functools.partial(_bn_relu_kernel, inv_m=1.0 / m),
        out_shape=jax.ShapeDtypeStruct((m, cout), out_dtype),
        grid_spec=pltpu.PrefetchScalarGridSpec(
            num_scalar_prefetch=0,
            grid=(m // tm, cout // tc),
            in_specs=_elementwise_specs(m, cout, tm, tc, 1),
            out_specs=pl.BlockSpec((tm, tc), lambda mi, cj: (mi, cj))),
        compiler_params=_cparams(("parallel", "parallel")),
    )(raw, stats, gamma, beta)


def _call_bn_add_relu_id(raw, stats, gamma, beta, sc):
    m, cout = raw.shape
    tm, tc = _pick_row_tile(m), _pick_channel_tile(cout)
    in_specs = _elementwise_specs(m, cout, tm, tc, 1) + [
        pl.BlockSpec((tm, tc), lambda mi, cj: (mi, cj)),  # identity shortcut (bf16)
    ]
    return pl.pallas_call(
        functools.partial(_bn_add_relu_id_kernel, inv_m=1.0 / m),
        out_shape=jax.ShapeDtypeStruct((m, cout), jnp.float32),
        grid_spec=pltpu.PrefetchScalarGridSpec(
            num_scalar_prefetch=0,
            grid=(m // tm, cout // tc),
            in_specs=in_specs,
            out_specs=pl.BlockSpec((tm, tc), lambda mi, cj: (mi, cj))),
        compiler_params=_cparams(("parallel", "parallel")),
    )(raw, stats, gamma, beta, sc)


def _call_bn_add_relu_proj(raw, stats, gamma, beta, rawsc, statssc, gs, bs):
    m, cout = raw.shape
    tm, tc = _pick_row_tile(m), _pick_channel_tile(cout)
    return pl.pallas_call(
        functools.partial(_bn_add_relu_proj_kernel, inv_m=1.0 / m),
        out_shape=jax.ShapeDtypeStruct((m, cout), jnp.float32),
        grid_spec=pltpu.PrefetchScalarGridSpec(
            num_scalar_prefetch=0,
            grid=(m // tm, cout // tc),
            in_specs=_elementwise_specs(m, cout, tm, tc, 2),
            out_specs=pl.BlockSpec((tm, tc), lambda mi, cj: (mi, cj))),
        compiler_params=_cparams(("parallel", "parallel")),
    )(raw, stats, gamma, beta, rawsc, statssc, gs, bs)


# --------------------------------------------------------------------------- #
# Host-side layout plumbing (pad / im2col / weight repack) — all in bf16
# --------------------------------------------------------------------------- #
def _extract_taps(x, ksize, stride, padding):
    """x: (N,H,W,C) -> (N*Ho*Wo, ksize*ksize*C) im2col (long-K layout)."""
    n, h, w, c = x.shape
    ho = (h + 2 * padding - ksize) // stride + 1
    wo = (w + 2 * padding - ksize) // stride + 1
    xp = jnp.pad(x, ((0, 0), (padding, padding), (padding, padding), (0, 0)))
    cols = []
    for ky in range(ksize):
        for kx in range(ksize):
            sl = jax.lax.slice(
                xp,
                (0, ky, kx, 0),
                (n, ky + stride * (ho - 1) + 1, kx + stride * (wo - 1) + 1, c),
                (1, stride, stride, 1))
            cols.append(sl.reshape(n * ho * wo, c))
    return jnp.concatenate(cols, axis=1), (n, ho, wo)


def _conv_weight_to_matrix(w):
    """(Cout, Cin, kh, kw) -> (kh*kw*Cin, Cout), tap-major / Cin-minor rows."""
    cout, cin, kh, kw = w.shape
    return jnp.transpose(w, (2, 3, 1, 0)).reshape(kh * kw * cin, cout)


def basic_block_forward(x, params, stride=1):
    """x: (N, H, W, Cin) float32 (NHWC). Returns (N, Ho, Wo, planes) float32."""
    n, h, w, cin = x.shape
    planes = params["w1"].shape[0]
    use_shortcut = (stride != 1) or (cin != planes)
    bf16 = jnp.bfloat16
    x_bf16 = x.astype(bf16)

    # ---- conv1 (3x3, stride, pad 1) -> BN1 -> ReLU (h1 emitted in bf16) ----
    taps1, (_, ho, wo) = _extract_taps(x_bf16, 3, stride, 1)
    raw1, st1 = _call_conv_stats(
        taps1, _conv_weight_to_matrix(params["w1"]).astype(bf16))
    h1 = _call_bn_relu(raw1, st1, params["g1"], params["b1"], bf16)

    # ---- conv2 (3x3, stride 1, pad 1) + BN2 (+ shortcut) + add + ReLU ----
    taps2, _ = _extract_taps(h1.reshape(n, ho, wo, planes), 3, 1, 1)
    w2 = _conv_weight_to_matrix(params["w2"]).astype(bf16)
    if use_shortcut:
        # 1x1 conv, stride s, pad 0 == strided spatial subsample + one matmul
        xs = x_bf16[:, ::stride, ::stride, :].reshape(n * ho * wo, cin)
        ws = params["wsc"].reshape(planes, cin).T.astype(bf16)  # (Cin, Cout)
        raw2, rawsc, st2, stsc = _call_conv_proj_stats(taps2, w2, xs, ws)
        out = _call_bn_add_relu_proj(raw2, st2, params["g2"], params["b2"],
                                     rawsc, stsc, params["gsc"], params["bsc"])
    else:
        raw2, st2 = _call_conv_stats(taps2, w2)
        xs = x_bf16.reshape(n * ho * wo, planes)     # identity shortcut (bf16 read, f32 add)
        out = _call_bn_add_relu_id(raw2, st2, params["g2"], params["b2"], xs)
    return out.reshape(n, ho, wo, planes)


# --------------------------------------------------------------------------- #
# Parameters & pure-JAX reference
# --------------------------------------------------------------------------- #
def init_params(key, in_planes, planes, stride):
    k1, k2, k3, k4, k5, k6 = jax.random.split(key, 6)

    def bn_params(k, c):
        ka, kb = jax.random.split(k)
        g = 1.0 + 0.1 * jax.random.normal(ka, (1, c), jnp.float32)
        b = 0.1 * jax.random.normal(kb, (1, c), jnp.float32)
        return g, b

    p = {}
    p["w1"] = jax.random.normal(k1, (planes, in_planes, 3, 3), jnp.float32) * 0.1
    p["g1"], p["b1"] = bn_params(k2, planes)
    p["w2"] = jax.random.normal(k3, (planes, planes, 3, 3), jnp.float32) * 0.1
    p["g2"], p["b2"] = bn_params(k4, planes)
    if stride != 1 or in_planes != planes:
        p["wsc"] = jax.random.normal(k5, (planes, in_planes, 1, 1), jnp.float32) * 0.1
        p["gsc"], p["bsc"] = bn_params(k6, planes)
    return p


def _reference(x, params, stride):
    def conv(z, w, s, pad):
        return jax.lax.conv_general_dilated(
            z, jnp.transpose(w, (2, 3, 1, 0)),
            window_strides=(s, s), padding=[(pad, pad), (pad, pad)],
            dimension_numbers=("NHWC", "HWIO", "NHWC"))

    def bn(hh, g, b):
        mu = hh.mean((0, 1, 2), keepdims=True)
        var = ((hh - mu) ** 2).mean((0, 1, 2), keepdims=True)
        return ((hh - mu) / jnp.sqrt(var + BN_EPS)
                * g.reshape(1, 1, 1, -1) + b.reshape(1, 1, 1, -1))

    planes = params["w1"].shape[0]
    cin = x.shape[-1]
    out = jax.nn.relu(bn(conv(x, params["w1"], stride, 1), params["g1"], params["b1"]))
    out = bn(conv(out, params["w2"], 1, 1), params["g2"], params["b2"])
    if stride != 1 or cin != planes:
        sc = bn(conv(x, params["wsc"], stride, 0), params["gsc"], params["bsc"])
    else:
        sc = x
    return jax.nn.relu(out + sc)


if __name__ == "__main__":
    key = jax.random.PRNGKey(0)
    configs = [
        # projection shortcut: stride 2 + channel change (BasicBlock downsample path)
        dict(n=2, h=16, w=16, in_planes=4, planes=8, stride=2),
        # identity shortcut; 256 channels exercises the channel-tile grid (2 x 128 tiles)
        dict(n=2, h=8, w=8, in_planes=256, planes=256, stride=1),
    ]
    for cfg in configs:
        key, kx, kp = jax.random.split(key, 3)
        x = jax.random.normal(
            kx, (cfg["n"], cfg["h"], cfg["w"], cfg["in_planes"]), jnp.float32)
        params = init_params(kp, cfg["in_planes"], cfg["planes"], cfg["stride"])

        out = jax.block_until_ready(basic_block_forward(x, params, cfg["stride"]))
        ref = _reference(x, params, cfg["stride"])

        assert out.shape == ref.shape, (out.shape, ref.shape)
        max_err = float(jnp.max(jnp.abs(out - ref)))
        # bf16 matmul operands / bf16 h1 (f32 accumulation & BN math) -> loosened tolerance.
        assert jnp.allclose(out, ref, atol=5e-2, rtol=5e-2), f"max abs err {max_err}"
    print("KERNEL_OK")
</pallas_src>

<mosaic_0001>
module attributes {stable_mosaic.version = 11 : i64} {
  func.func @_conv_stats_kernel(%arg0: i32, %arg1: i32, %arg2: memref<128x36xbf16, #tpu.memory_space<vmem>>, %arg3: memref<36x8xbf16, #tpu.memory_space<vmem>>, %arg4: memref<128x8xf32, #tpu.memory_space<vmem>>, %arg5: memref<2x8xf32, #tpu.memory_space<vmem>>) attributes {dimension_semantics = [#tpu.dimension_semantics<parallel>, #tpu.dimension_semantics<arbitrary>], iteration_bounds = array<i64: 1, 1>, scalar_prefetch = 0 : i64, scratch_operands = 0 : i64, tpu.core_type = #tpu.core_type<tc>, window_params = [{transform_indices = @transform_0, window_bounds = array<i64: 128, 36>}, {transform_indices = @transform_1, window_bounds = array<i64: 36, 8>}, {transform_indices = @transform_2, window_bounds = array<i64: 128, 8>}, {transform_indices = @transform_3, window_bounds = array<i64: 2, 8>}]} {
    %c0 = arith.constant 0 : index
    %c0_0 = arith.constant 0 : index
    %0 = vector.load %arg2[%c0, %c0_0] : memref<128x36xbf16, #tpu.memory_space<vmem>>, vector<128x36xbf16>
    %c0_1 = arith.constant 0 : index
    %c0_2 = arith.constant 0 : index
    %1 = vector.load %arg3[%c0_1, %c0_2] : memref<36x8xbf16, #tpu.memory_space<vmem>>, vector<36x8xbf16>
    %cst = arith.constant dense<0.000000e+00> : vector<128x8xf32>
    %2 = tpu.matmul %0, %1, %cst {dimension_numbers = #tpu.dot_dimension_numbers<[1], [0], [0], [1], [0, 0, 1, 1], [], []>} : vector<128x36xbf16>, vector<36x8xbf16>, vector<128x8xf32> -> vector<128x8xf32>
    %c0_3 = arith.constant 0 : index
    %c0_4 = arith.constant 0 : index
    %3 = vector.load %arg4[%c0_3, %c0_4] : memref<128x8xf32, #tpu.memory_space<vmem>>, vector<128x8xf32>
    tpu.vector_store %arg4[%c0_3, %c0_4], %2 {strides = array<i32>} : memref<128x8xf32, #tpu.memory_space<vmem>>, vector<128x8xf32>,
    %c0_i32 = arith.constant 0 : i32
    %4 = arith.cmpi eq, %arg1, %c0_i32 : i32
    %5 = arith.extui %4 : i1 to i32
    %c0_i32_5 = arith.constant 0 : i32
    %6 = arith.cmpi ne, %5, %c0_i32_5 : i32
    scf.if %6 {
      %cst_12 = arith.constant 0.000000e+00 : f32
      %16 = vector.broadcast %cst_12 : f32 to vector<2x8xf32>
      %c0_13 = arith.constant 0 : index
      %c0_14 = arith.constant 0 : index
      %17 = vector.load %arg5[%c0_13, %c0_14] : memref<2x8xf32, #tpu.memory_space<vmem>>, vector<2x8xf32>
      tpu.vector_store %arg5[%c0_13, %c0_14], %16 {strides = array<i32>} : memref<2x8xf32, #tpu.memory_space<vmem>>, vector<2x8xf32>,
    } else {
    }
    %cst_6 = arith.constant dense<0.000000e+00> : vector<8xf32>
    %7 = vector.multi_reduction <add>, %2, %cst_6 [0] : vector<128x8xf32> to vector<8xf32>
    %8 = vector.shape_cast %7 : vector<8xf32> to vector<1x8xf32>
    %9 = arith.mulf %2, %2 : vector<128x8xf32>
    %cst_7 = arith.constant dense<0.000000e+00> : vector<8xf32>
    %10 = vector.multi_reduction <add>, %9, %cst_7 [0] : vector<128x8xf32> to vector<8xf32>
    %11 = vector.shape_cast %10 : vector<8xf32> to vector<1x8xf32>
    %c0_8 = arith.constant 0 : index
    %c0_9 = arith.constant 0 : index
    %12 = vector.load %arg5[%c0_8, %c0_9] : memref<2x8xf32, #tpu.memory_space<vmem>>, vector<2x8xf32>
    %13 = tpu.concatenate %8, %11 in 0 : vector<1x8xf32>, vector<1x8xf32> -> vector<2x8xf32>
    %14 = arith.addf %12, %13 : vector<2x8xf32>
    %c0_10 = arith.constant 0 : index
    %c0_11 = arith.constant 0 : index
    %15 = vector.load %arg5[%c0_10, %c0_11] : memref<2x8xf32, #tpu.memory_space<vmem>>, vector<2x8xf32>
    tpu.vector_store %arg5[%c0_10, %c0_11], %14 {strides = array<i32>} : memref<2x8xf32, #tpu.memory_space<vmem>>, vector<2x8xf32>,
    return
  }
  func.func @transform_0(%arg0: i32, %arg1: i32) -> (i32, i32) {
    %c0_i32 = arith.constant 0 : i32
    %c0_i32_0 = arith.constant 0 : i32
    return %arg1, %c0_i32 : i32, i32
  }
  func.func @transform_1(%arg0: i32, %arg1: i32) -> (i32, i32) {
    %c0_i32 = arith.constant 0 : i32
    %c0_i32_0 = arith.constant 0 : i32
    return %c0_i32, %arg0 : i32, i32
  }
  func.func @transform_2(%arg0: i32, %arg1: i32) -> (i32, i32) {
    %c0_i32 = arith.constant 0 : i32
    return %arg1, %arg0 : i32, i32
  }
  func.func @transform_3(%arg0: i32, %arg1: i32) -> (i32, i32) {
    %c0_i32 = arith.constant 0 : i32
    %c0_i32_0 = arith.constant 0 : i32
    return %c0_i32, %arg0 : i32, i32
  }
}

</mosaic_0001>

<llo_original>
// kernel: tpu_custom_call.1
$region0: #{tpu_custom_call.1}
  #allocation0 [shape = 'u32[]', space=smem, size = 0x4, offset = 0x4, fixed_abs, tag = 'smem constant byte address 0x4 - core index']
  #allocation1 [shape = 'u32[144,128]{1,0:T(1,128)}', space=vmem, size = 0x12000, scoped, tag = 'internal scratch']
  %s0 = inlined_call_operand.vmem [shape: bf16[128,36], index: 0, kind: input, shape index: {}]
  %s1 = inlined_call_operand.vmem [shape: bf16[36,8], index: 1, kind: input, shape index: {}]
  %s2 = inlined_call_operand.vmem [shape: f32[128,8], index: 2, kind: output, shape index: {0}]
  %s3 = inlined_call_operand.hbm [shape: f32[2,8], index: 3, kind: output, shape index: {1}]
  %4 = xla_tuple %s2, %s3
  %s5 = sld [smem:[#allocation0]]
  $region30: #{tpu_custom_call.1} parent=0
    _
  %s7 = ssub.s32 1, %s5
  %s8 = scalar_select 0, %s7, %s5
  $region1: #{tpu_custom_call.1} parent=0
    #allocation2 [shape = 'u8[1024]{0}', space=vmem, size = 0x400, scoped, tag = 'output window, operand 1, single buffered']
    #allocation3 [shape = 's32[1]{0}', space=sflag, size = 0x4, scoped, tag = 'scoped memory for tpu_custom_call.1']
    %9 = vsyncpa [#allocation3], 0
    // Predicated region
    $region2: #{tpu_custom_call.1} parent=1 // pred_check
      _
    $region3: #{tpu_custom_call.1} parent=1 // pred_check_branch
      %11 = sbr.rel (0) target = $region5
    $region4: #{tpu_custom_call.1} parent=1 // pred_region
      _
    $region5: #{tpu_custom_call.1} parent=1 // pred_fallthru
      _
    // Predicated region
    $region6: #{tpu_custom_call.1} parent=1 // pred_check
      _
    $region7: #{tpu_custom_call.1} parent=1 // pred_check_branch
      %13 = sbr.rel (0) target = $region9
    $region8: #{tpu_custom_call.1} parent=1 // pred_region
      _
    $region9: #{tpu_custom_call.1} parent=1 // pred_fallthru
      _
    %v15 = vld [vmem:[%s0] sm:$0xf]
    %v16 = vld [vmem:[%s0 + $0x4] sm:$0xf]
    %v17 = vld [vmem:[%s0 + $0x8] sm:$0xf]
    %v18 = vld [vmem:[%s0 + $0xc] sm:$0xf]
    %v19 = vld [vmem:[%s0 + $0x10] sm:$0xf]
    %v20 = vld [vmem:[%s0 + $0x14] sm:$0xf]
    %v21 = vld [vmem:[%s0 + $0x18] sm:$0xf]
    %v22 = vld [vmem:[%s0 + $0x1c] sm:$0xf]
    %v23 = vld [vmem:[%s0 + $0x20] sm:$0xf]
    %v24 = vld [vmem:[%s0 + $0x24] sm:$0xf]
    %v25 = vld [vmem:[%s0 + $0x28] sm:$0xf]
    %v26 = vld [vmem:[%s0 + $0x2c] sm:$0xf]
    %v27 = vld [vmem:[%s0 + $0x30] sm:$0xf]
    %v28 = vld [vmem:[%s0 + $0x34] sm:$0xf]
    %v29 = vld [vmem:[%s0 + $0x38] sm:$0xf]
    %v30 = vld [vmem:[%s0 + $0x3c] sm:$0xf]
    %v31 = vld [vmem:[%s1] sm:$0xf]
    %v32 = vld [vmem:[%s1 + $0x4] sm:$0xf]
    %v33 = vld [vmem:[%s1 + $0x8] sm:$0xf]
    %v34 = vld [vmem:[%s1 + $0xc] sm:$0xf]
    %v35 = vld [vmem:[%s1 + $0x10] sm:$0x3]
    %v52 = vunpack.c.l.b16 %v15
    %v53 = vunpack.c.l.b16 %v16
    %v54 = vunpack.c.l.b16 %v17
    %v55 = vunpack.c.l.b16 %v18
    %v56 = vunpack.c.l.b16 %v19
    %v57 = vunpack.c.l.b16 %v20
    %v58 = vunpack.c.l.b16 %v21
    %v59 = vunpack.c.l.b16 %v22
    %v60 = vunpack.c.l.b16 %v23
    %v61 = vunpack.c.l.b16 %v24
    %v62 = vunpack.c.l.b16 %v25
    %v63 = vunpack.c.l.b16 %v26
    %v64 = vunpack.c.l.b16 %v27
    %v65 = vunpack.c.l.b16 %v28
    %v66 = vunpack.c.l.b16 %v29
    %v67 = vunpack.c.l.b16 %v30
    %v68 = vpack.c.b16 %v53, %v52
    %v69 = vpack.c.b16 %v55, %v54
    %v70 = vpack.c.b16 %v57, %v56
    %v71 = vpack.c.b16 %v59, %v58
    %v72 = vpack.c.b16 %v61, %v60
    %v73 = vpack.c.b16 %v63, %v62
    %v74 = vpack.c.b16 %v65, %v64
    %v75 = vpack.c.b16 %v67, %v66
    %v81 = vunpack.c.l.b16 %v31
    %v82 = vunpack.c.l.b16 %v32
    %v83 = vunpack.c.l.b16 %v33
    %v84 = vunpack.c.l.b16 %v34
    %v85 = vunpack.c.l.b16 %v35
    %v86 = vpack.c.b16 %v82, %v81
    %v87 = vpack.c.b16 %v84, %v83
    %v88 = vpack.c.b16 %v85, %v85
    %vm91 = vcmask 293888
    %v93 = vsel %vm91, %v68, 0
    %v96 = vsel %vm91, %v69, 0
    %v99 = vsel %vm91, %v70, 0
    %v102 = vsel %vm91, %v71, 0
    %v105 = vsel %vm91, %v72, 0
    %v108 = vsel %vm91, %v73, 0
    %v111 = vsel %vm91, %v74, 0
    %v114 = vsel %vm91, %v75, 0
    %vm116 = vcmask 1041408
    %v118 = vsel %vm116, %v88, 0
    %120 = vmatprep.subr.bf16.mxu0 0
    %121 = vmatpush1.bf16.msra.mxu0 %v86
    %122 = vmatprep.subr.bf16.mxu0 0
    %123 = vmatpush1.bf16.msra.mxu0 %v87
    %124 = vmatprep.subr.bf16.mxu0 0
    %125 = vmatpush1.bf16.msra.mxu0 %v118
    %126 = vmatprep.subr.bf16.mxu0 0
    %127 = vmatpush1.bf16.msra.mxu0 0
    %128 = vmatprep.subr.bf16.mxu0 0
    %129 = vmatpush1.bf16.msra.mxu0 0
    %130 = vmatprep.subr.bf16.mxu0 0
    %131 = vmatpush1.bf16.msra.mxu0 0
    %132 = vmatprep.subr.bf16.mxu0 0
    %133 = vmatpush1.bf16.msra.mxu0 0
    %134 = vmatprep.subr.bf16.mxu0 0
    %135 = vmatpush1.bf16.msra.mxu0 0
    %136 = vmatprep.subr.bf16.mxu0 0
    %137 = vmatpush1.bf16.msra.mxu0 0
    %138 = vmatprep.subr.bf16.mxu0 0
    %139 = vmatpush1.bf16.msra.mxu0 0
    %140 = vmatprep.subr.bf16.mxu0 0
    %141 = vmatpush1.bf16.msra.mxu0 0
    %142 = vmatprep.subr.bf16.mxu0 0
    %143 = vmatpush1.bf16.msra.mxu0 0
    %144 = vmatprep.subr.bf16.mxu0 0
    %145 = vmatpush1.bf16.msra.mxu0 0
    %146 = vmatprep.subr.bf16.mxu0 0
    %147 = vmatpush1.bf16.msra.mxu0 0
    %148 = vmatprep.subr.bf16.mxu0 0
    %149 = vmatpush1.bf16.msra.mxu0 0
    %150 = vmatprep.subr.bf16.mxu0 0
    %151 = vmatpush1.bf16.msra.mxu0 0
    %152 = vmatprep.mubr.bf16.mxu0 0
    %153 = vmatmul.mubr.bf16.gmra.mrb[0].mxu0 %v93
    %v154 = vpop.f32.mrb[0].mxu0
    %v155 = vadd.f32 0.0, %v154
    %v156 = vpop.f32.mrb[0].mxu0
    %v157 = vpop.f32.mrb[0].mxu0
    %v158 = vadd.f32 0.0, %v157
    %v159 = vpop.f32.mrb[0].mxu0
    %160 = vmatprep.mubr.bf16.mxu0 0
    %161 = vmatmul.mubr.bf16.gmra.mrb[0].mxu0 %v96
    %v162 = vpop.f32.mrb[0].mxu0
    %v163 = vadd.f32 0.0, %v162
    %v164 = vpop.f32.mrb[0].mxu0
    %v165 = vpop.f32.mrb[0].mxu0
    %v166 = vadd.f32 0.0, %v165
    %v167 = vpop.f32.mrb[0].mxu0
    %168 = vmatprep.mubr.bf16.mxu0 0
    %169 = vmatmul.mubr.bf16.gmra.mrb[0].mxu0 %v99
    %v170 = vpop.f32.mrb[0].mxu0
    %v171 = vadd.f32 0.0, %v170
    %v172 = vpop.f32.mrb[0].mxu0
    %v173 = vpop.f32.mrb[0].mxu0
    %v174 = vadd.f32 0.0, %v173
    %v175 = vpop.f32.mrb[0].mxu0
    %176 = vmatprep.mubr.bf16.mxu0 0
    %177 = vmatmul.mubr.bf16.gmra.mrb[0].mxu0 %v102
    %v178 = vpop.f32.mrb[0].mxu0
    %v179 = vadd.f32 0.0, %v178
    %v180 = vpop.f32.mrb[0].mxu0
    %v181 = vpop.f32.mrb[0].mxu0
    %v182 = vadd.f32 0.0, %v181
    %v183 = vpop.f32.mrb[0].mxu0
    %184 = vmatprep.mubr.bf16.mxu0 0
    %185 = vmatmul.mubr.bf16.gmra.mrb[0].mxu0 %v105
    %v186 = vpop.f32.mrb[0].mxu0
    %v187 = vadd.f32 0.0, %v186
    %v188 = vpop.f32.mrb[0].mxu0
    %v189 = vpop.f32.mrb[0].mxu0
    %v190 = vadd.f32 0.0, %v189
    %v191 = vpop.f32.mrb[0].mxu0
    %192 = vmatprep.mubr.bf16.mxu0 0
    %193 = vmatmul.mubr.bf16.gmra.mrb[0].mxu0 %v108
    %v194 = vpop.f32.mrb[0].mxu0
    %v195 = vadd.f32 0.0, %v194
    %v196 = vpop.f32.mrb[0].mxu0
    %v197 = vpop.f32.mrb[0].mxu0
    %v198 = vadd.f32 0.0, %v197
    %v199 = vpop.f32.mrb[0].mxu0
    %200 = vmatprep.mubr.bf16.mxu0 0
    %201 = vmatmul.mubr.bf16.gmra.mrb[0].mxu0 %v111
    %v202 = vpop.f32.mrb[0].mxu0
    %v203 = vadd.f32 0.0, %v202
    %v204 = vpop.f32.mrb[0].mxu0
    %v205 = vpop.f32.mrb[0].mxu0
    %v206 = vadd.f32 0.0, %v205
    %v207 = vpop.f32.mrb[0].mxu0
    %208 = vmatprep.mubr.bf16.mxu0 0
    %209 = vmatmul.mubr.bf16.gmra.mrb[0].mxu0 %v114
    %v210 = vpop.f32.mrb[0].mxu0
    %v211 = vadd.f32 0.0, %v210
    %v212 = vpop.f32.mrb[0].mxu0
    %v213 = vpop.f32.mrb[0].mxu0
    %v214 = vadd.f32 0.0, %v213
    %v215 = vpop.f32.mrb[0].mxu0
    %216 = vdwg.mxu0
    %vm217 = vcmask 64512
    %218 = vst.msk [vmem:[%s2] sm:$0xff] %vm217, %v155
    %219 = vst.msk [vmem:[%s2 + $0x8] sm:$0xff] %vm217, %v158
    %220 = vst.msk [vmem:[%s2 + $0x10] sm:$0xff] %vm217, %v163
    %221 = vst.msk [vmem:[%s2 + $0x18] sm:$0xff] %vm217, %v166
    %222 = vst.msk [vmem:[%s2 + $0x20] sm:$0xff] %vm217, %v171
    %223 = vst.msk [vmem:[%s2 + $0x28] sm:$0xff] %vm217, %v174
    %224 = vst.msk [vmem:[%s2 + $0x30] sm:$0xff] %vm217, %v179
    %225 = vst.msk [vmem:[%s2 + $0x38] sm:$0xff] %vm217, %v182
    %226 = vst.msk [vmem:[%s2 + $0x40] sm:$0xff] %vm217, %v187
    %227 = vst.msk [vmem:[%s2 + $0x48] sm:$0xff] %vm217, %v190
    %228 = vst.msk [vmem:[%s2 + $0x50] sm:$0xff] %vm217, %v195
    %229 = vst.msk [vmem:[%s2 + $0x58] sm:$0xff] %vm217, %v198
    %230 = vst.msk [vmem:[%s2 + $0x60] sm:$0xff] %vm217, %v203
    %231 = vst.msk [vmem:[%s2 + $0x68] sm:$0xff] %vm217, %v206
    %232 = vst.msk [vmem:[%s2 + $0x70] sm:$0xff] %vm217, %v211
    %233 = vst.msk [vmem:[%s2 + $0x78] sm:$0xff] %vm217, %v214
    %p234 = scmp.eq.s32.totalorder 0, 0
    // Predicated region
    $region10: #{tpu_custom_call.1} parent=1 // pred_check
      %p235 = pneg %p234
    $region11: #{tpu_custom_call.1} parent=1 // pred_check_branch
      %237 = sbr.rel (%p235) target = $region13
    $region12: #{tpu_custom_call.1} parent=1 // pred_region
      %vm238 = vcmask 58368
      %239 = vst.msk [vmem:[#allocation2] sm:$0x3] %vm238, 0.0
    $region13: #{tpu_custom_call.1} parent=1 // pred_fallthru
      _
    %v240 = vsel %vm217, %v155, 0.0
    %v241 = vsel %vm217, %v158, 0.0
    %v242 = vadd.f32 %v240, %v241
    %v243 = vsel %vm217, %v163, 0.0
    %v244 = vadd.f32 %v242, %v243
    %v245 = vsel %vm217, %v166, 0.0
    %v246 = vadd.f32 %v244, %v245
    %v247 = vsel %vm217, %v171, 0.0
    %v248 = vadd.f32 %v246, %v247
    %v249 = vsel %vm217, %v174, 0.0
    %v250 = vadd.f32 %v248, %v249
    %v251 = vsel %vm217, %v179, 0.0
    %v252 = vadd.f32 %v250, %v251
    %v253 = vsel %vm217, %v182, 0.0
    %v254 = vadd.f32 %v252, %v253
    %v255 = vsel %vm217, %v187, 0.0
    %v256 = vadd.f32 %v254, %v255
    %v257 = vsel %vm217, %v190, 0.0
    %v258 = vadd.f32 %v256, %v257
    %v259 = vsel %vm217, %v195, 0.0
    %v260 = vadd.f32 %v258, %v259
    %v261 = vsel %vm217, %v198, 0.0
    %v262 = vadd.f32 %v260, %v261
    %v263 = vsel %vm217, %v203, 0.0
    %v264 = vadd.f32 %v262, %v263
    %v265 = vsel %vm217, %v206, 0.0
    %v266 = vadd.f32 %v264, %v265
    %v267 = vsel %vm217, %v211, 0.0
    %v268 = vadd.f32 %v266, %v267
    %v269 = vsel %vm217, %v214, 0.0
    %v270 = vadd.f32 %v268, %v269
    %v271 = vrot.slane %v270, 4
    %v272 = vadd.f32 %v270, %v271
    %v273 = vrot.slane %v272, 2
    %v274 = vadd.f32 %v272, %v273
    %v275 = vrot.slane %v274, 1
    %v276 = vadd.f32 %v274, %v275
    %v277 = vmul.f32 %v155, %v155
    %v278 = vmul.f32 %v158, %v158
    %v279 = vmul.f32 %v163, %v163
    %v280 = vmul.f32 %v166, %v166
    %v281 = vmul.f32 %v171, %v171
    %v282 = vmul.f32 %v174, %v174
    %v283 = vmul.f32 %v179, %v179
    %v284 = vmul.f32 %v182, %v182
    %v285 = vmul.f32 %v187, %v187
    %v286 = vmul.f32 %v190, %v190
    %v287 = vmul.f32 %v195, %v195
    %v288 = vmul.f32 %v198, %v198
    %v289 = vmul.f32 %v203, %v203
    %v290 = vmul.f32 %v206, %v206
    %v291 = vmul.f32 %v211, %v211
    %v292 = vmul.f32 %v214, %v214
    %v293 = vsel %vm217, %v277, 0.0
    %v294 = vsel %vm217, %v278, 0.0
    %v295 = vadd.f32 %v293, %v294
    %v296 = vsel %vm217, %v279, 0.0
    %v297 = vadd.f32 %v295, %v296
    %v298 = vsel %vm217, %v280, 0.0
    %v299 = vadd.f32 %v297, %v298
    %v300 = vsel %vm217, %v281, 0.0
    %v301 = vadd.f32 %v299, %v300
    %v302 = vsel %vm217, %v282, 0.0
    %v303 = vadd.f32 %v301, %v302
    %v304 = vsel %vm217, %v283, 0.0
    %v305 = vadd.f32 %v303, %v304
    %v306 = vsel %vm217, %v284, 0.0
    %v307 = vadd.f32 %v305, %v306
    %v308 = vsel %vm217, %v285, 0.0
    %v309 = vadd.f32 %v307, %v308
    %v310 = vsel %vm217, %v286, 0.0
    %v311 = vadd.f32 %v309, %v310
    %v312 = vsel %vm217, %v287, 0.0
    %v313 = vadd.f32 %v311, %v312
    %v314 = vsel %vm217, %v288, 0.0
    %v315 = vadd.f32 %v313, %v314
    %v316 = vsel %vm217, %v289, 0.0
    %v317 = vadd.f32 %v315, %v316
    %v318 = vsel %vm217, %v290, 0.0
    %v319 = vadd.f32 %v317, %v318
    %v320 = vsel %vm217, %v291, 0.0
    %v321 = vadd.f32 %v319, %v320
    %v322 = vsel %vm217, %v292, 0.0
    %v323 = vadd.f32 %v321, %v322
    %v324 = vrot.slane %v323, 4
    %v325 = vadd.f32 %v323, %v324
    %v326 = vrot.slane %v325, 2
    %v327 = vadd.f32 %v325, %v326
    %v328 = vrot.slane %v327, 1
    %v329 = vadd.f32 %v327, %v328
    %v330 = vld [vmem:[#allocation2] sm:$0x3]
    %vm331 = vcmask 1040384
    %v332 = vsel %vm331, %v276, %v329
    %v333 = vadd.f32 %v330, %v332
    %vm334 = vcmask 58368
    %335 = vst.msk [vmem:[#allocation2] sm:$0x3] %vm334, %v333
    // Predicated region
    $region14: #{tpu_custom_call.1} parent=1 // pred_check
      _
    $region15: #{tpu_custom_call.1} parent=1 // pred_check_branch
      %337 = sbr.rel (0) target = $region17
    $region16: #{tpu_custom_call.1} parent=1 // pred_region
      _
    $region17: #{tpu_custom_call.1} parent=1 // pred_fallthru
      _
    // Predicated region
    $region18: #{tpu_custom_call.1} parent=1 // pred_check
      _
    $region19: #{tpu_custom_call.1} parent=1 // pred_check_branch
      %339 = sbr.rel (0) target = $region21
    $region20: #{tpu_custom_call.1} parent=1 // pred_region
      %s341 = ssub.s32 32, 32
      %342 = vsyncadd [#allocation3], %s341
      %s344 = sshll.u32 [#allocation2], 4
      %s345 = int_to_ptr.vmem [resolvable:$true] %s344
      %347 = dma.vmem_to_hbm [thread:$0]  %s345, 32, %s3, [#allocation3]
    $region21: #{tpu_custom_call.1} parent=1 // pred_fallthru
      _
    // Predicated region
    $region22: #{tpu_custom_call.1} parent=1 // pred_check
      _
    $region23: #{tpu_custom_call.1} parent=1 // pred_check_branch
      %349 = sbr.rel (0) target = $region25
    $region24: #{tpu_custom_call.1} parent=1 // pred_region
      _
    $region25: #{tpu_custom_call.1} parent=1 // pred_fallthru
      _
    // Predicated region
    $region26: #{tpu_custom_call.1} parent=1 // pred_check
      _
    $region27: #{tpu_custom_call.1} parent=1 // pred_check_branch
      %351 = sbr.rel (0) target = $region29
    $region28: #{tpu_custom_call.1} parent=1 // pred_region
      %352 = dma.done [#allocation3], 32
    $region29: #{tpu_custom_call.1} parent=1 // pred_fallthru
      _
    %353 = vsyncpa [#allocation3], 1

</llo_original>
